<compile_context>
chip_gen: v5e
topology: v5e:2x2
jax: 0.10.0
libtpu: 0.0.40
codegen_flags: <defaults>
</compile_context>

<pallas_src>
import functools

import jax
import jax.numpy as jnp
from jax.experimental import pallas as pl
from jax.experimental.pallas import tpu as pltpu


# -----------------------------------------------------------------------------
# Chip detection (trace-time, best effort, never raises)
# -----------------------------------------------------------------------------
def _chip_generation():
    """Lowercase chip-generation string, e.g. 'tpu v6e'; '' if unknown."""
    try:
        info = pltpu.get_tpu_info()
        for attr in ("chip_version", "version", "chip", "generation",
                     "device_kind", "name"):
            v = getattr(info, attr, None)
            if v is None:
                continue
            s = str(v).lower()
            if "v" in s:
                return s
    except Exception:
        pass
    try:
        return jax.devices()[0].device_kind.lower()
    except Exception:
        return ""


def _chip_config():
    """Generation-aware block / scoped-VMEM budgets, TC count, bf16 support."""
    gen = _chip_generation()
    cfg = {
        # Conservative defaults: valid everywhere (incl. v7x's 64 MiB VMEM).
        "max_block_bytes": 4 * 1024 * 1024,
        "vmem_limit_bytes": 32 * 1024 * 1024,
        "tc_per_chip": 1,
        "bf16_math": True,
    }
    if "v5" in gen:
        # 128 MiB physical VMEM; no bf16 VPU/EUP -> upcast bf16 to f32.
        cfg.update(max_block_bytes=8 * 1024 * 1024,
                   vmem_limit_bytes=64 * 1024 * 1024,
                   bf16_math=False)
    elif "v6" in gen:
        cfg.update(max_block_bytes=8 * 1024 * 1024,
                   vmem_limit_bytes=64 * 1024 * 1024)
    elif "v7" in gen:
        # Smaller (64 MiB) physical VMEM but 2 TensorCores per chip.
        cfg.update(max_block_bytes=4 * 1024 * 1024,
                   vmem_limit_bytes=32 * 1024 * 1024,
                   tc_per_chip=2)
    return cfg


def _compute_dtype(x_dtype, bf16_math):
    x_dtype = jnp.dtype(x_dtype)
    if x_dtype == jnp.bfloat16:
        return jnp.bfloat16 if bf16_math else jnp.float32
    if x_dtype == jnp.float16:
        return jnp.float32
    if jnp.issubdtype(x_dtype, jnp.floating):
        return x_dtype
    return jnp.float32


def _sublane_pack(dtype):
    """Rows per vreg for this storage dtype: 8 (32-bit), 16 (16-bit), 32 (8-bit)."""
    return {4: 8, 2: 16, 1: 32}.get(jnp.dtype(dtype).itemsize, 8)


# -----------------------------------------------------------------------------
# Kernel
# -----------------------------------------------------------------------------
def _lambda_silu_kernel(x_ref, o_ref, *, compute_dtype):
    # SiLU via the numerically stable tanh identity:
    #     x * sigmoid(x) = 0.5 * x * (1 + tanh(x / 2))
    # -> one EUP transcendental (tanh) + two VALU ops; the kernel is HBM-bound
    #    so compute is fully hidden, and there is no exp overflow / approx-
    #    reciprocal error for very negative x.
    x = x_ref[...].astype(compute_dtype)
    h = x * 0.5
    o_ref[...] = (h * jnp.tanh(h) + h).astype(o_ref.dtype)


# -----------------------------------------------------------------------------
# Wrapper
# -----------------------------------------------------------------------------
def lambda_forward(
    x,
    *,
    max_block_bytes=None,        # default: generation-aware (8 MiB v5e/v6e, 4 MiB v7x)
    vmem_limit_bytes=None,       # default: generation-aware (64 MiB v5e/v6e, 32 MiB v7x)
    min_pallas_bytes=1024 * 1024,
    force_pallas=False,
):
    """Apply Lambda(lambda x: x * sigmoid(x)) via a Pallas TPU kernel.

    Accepts any shape (NCHW in this model); returns the same shape/dtype.
    """
    lambd = lambda t: t * jax.nn.sigmoid(t)   # the concrete lambda this Lambda wraps

    orig_shape = x.shape
    total = x.size
    if total == 0 or x.ndim == 0:
        return lambd(x)

    cfg = _chip_config()
    if max_block_bytes is None:
        max_block_bytes = cfg["max_block_bytes"]
    if vmem_limit_bytes is None:
        vmem_limit_bytes = cfg["vmem_limit_bytes"]
    tc_per_chip = cfg["tc_per_chip"]

    in_dtype = jnp.dtype(x.dtype)
    compute_dtype = _compute_dtype(in_dtype, cfg["bf16_math"])
    # Charge the block budget in compute-dtype bytes so a bf16->f32 upcast
    # (v5e) cannot double the effective per-block VMEM footprint.
    budget_itemsize = max(in_dtype.itemsize, jnp.dtype(compute_dtype).itemsize)
    total_bytes = total * in_dtype.itemsize

    # Small / single-grid-step inputs: a pallas_call blocks XLA elementwise
    # fusion and adds fixed launch+DMA cost -> let XLA handle them.
    if not force_pallas and (total_bytes < min_pallas_bytes
                             or total * budget_itemsize <= max_block_bytes):
        return lambd(x)

    pack = _sublane_pack(in_dtype)

    # --- choose a lane-dense (rows, cols) slab -------------------------------
    # The tensor is contiguous, so any factorization of `total` is a free
    # wrapper-side reshape.  Pick `cols` = largest divisor of `total` that is a
    # multiple of 128 and fits the block budget -> unmasked lane-dense stores.
    max_cols = max(128, (max_block_bytes // (pack * budget_itemsize)) // 128 * 128)
    cols = 0
    if total % 128 == 0:
        candidates = [c for c in range(128, min(max_cols, total) + 1, 128)
                      if total % c == 0]
        if candidates:
            good = [c for c in candidates if (total // c) % pack == 0]
            okay = [c for c in candidates if (total // c) >= pack]
            cols = max(good) if good else (max(okay) if okay else max(candidates))

    dim_sem = ("parallel",)

    if cols:
        # -------- lane-dense path --------
        rows = total // cols
        x2d = x.reshape(rows, cols)

        tr = max_block_bytes // (cols * budget_itemsize)
        tr = max(pack, (tr // pack) * pack)
        tr = min(tr, rows)

        steps = pl.cdiv(rows, tr)
        if tc_per_chip > 1 and rows >= 2 * pack and steps % tc_per_chip != 0:
            # Make sure both TensorCores get (roughly balanced) work on v7x.
            target = max(tc_per_chip,
                         ((steps + tc_per_chip - 1) // tc_per_chip) * tc_per_chip)
            tr_new = -(-rows // target)
            tr_new = max(pack, (tr_new // pack) * pack)
            tr = min(tr_new, rows)
            steps = pl.cdiv(rows, tr)

        if tc_per_chip > 1 and steps % tc_per_chip == 0:
            core_par = getattr(pltpu, "CORE_PARALLEL", None)
            dim_sem = (core_par,) if core_par is not None else ("parallel",)

        grid = (steps,)
        in_specs = [pl.BlockSpec((tr, cols), lambda i: (i, 0))]
        out_specs = pl.BlockSpec((tr, cols), lambda i: (i, 0))
    else:
        # -------- fallback: no multiple-of-128 factorization of `total` ------
        # Use the natural NCHW slab; boundary lanes may get masked stores.
        if x.ndim >= 2:
            cols = x.shape[-1] * x.shape[-2]
        else:
            cols = x.shape[-1]
        rows = total // cols
        x2d = x.reshape(rows, cols)

        row_bytes = cols * budget_itemsize
        if row_bytes <= max_block_bytes:
            tc = cols
            tr = max(pack, (max_block_bytes // row_bytes) // pack * pack)
            tr = min(tr, rows)
        else:
            tr = min(rows, pack)
            tc = min(cols, max(128,
                               (max_block_bytes // (tr * budget_itemsize)) // 128 * 128))

        if tc == cols:
            grid = (pl.cdiv(rows, tr),)
            in_specs = [pl.BlockSpec((tr, cols), lambda i: (i, 0))]
            out_specs = pl.BlockSpec((tr, cols), lambda i: (i, 0))
            dim_sem = ("parallel",)
        else:
            grid = (pl.cdiv(rows, tr), pl.cdiv(cols, tc))
            in_specs = [pl.BlockSpec((tr, tc), lambda i, j: (i, j))]
            out_specs = pl.BlockSpec((tr, tc), lambda i, j: (i, j))
            dim_sem = ("parallel", "parallel")

    kernel = functools.partial(_lambda_silu_kernel, compute_dtype=compute_dtype)

    out2d = pl.pallas_call(
        kernel,
        out_shape=jax.ShapeDtypeStruct(x2d.shape, x.dtype),
        grid_spec=pltpu.PrefetchScalarGridSpec(
            num_scalar_prefetch=0,
            grid=grid,
            in_specs=in_specs,
            out_specs=out_specs,
        ),
        compiler_params=pltpu.CompilerParams(
            dimension_semantics=dim_sem,
            vmem_limit_bytes=vmem_limit_bytes,
        ),
        # Elementwise, same shape/dtype: lets XLA update in place when x is
        # donated (otherwise it inserts a copy; not a bandwidth win either way).
        input_output_aliases={0: 0},
    )(x2d)
    return out2d.reshape(orig_shape)


if __name__ == "__main__":
    key = jax.random.PRNGKey(0)
    k1, k2, k3 = jax.random.split(key, 3)

    # Small NCHW activation consistent with the module's usage in experiments/hyper.py.
    x = jax.random.normal(k1, (2, 4, 16, 16), dtype=jnp.float32)
    y_ref = x * jax.nn.sigmoid(x)
    y = lambda_forward(x, force_pallas=True)       # force the Pallas path for the test
    jax.block_until_ready(y)
    assert y.shape == x.shape and y.dtype == x.dtype
    assert jnp.allclose(y, y_ref, atol=1e-4, rtol=1e-4)

    # Exercise the multi-step lane-dense tiling path with a small block budget
    # (keeps test shapes small while covering the tiled / grid>1 code path).
    x2 = jax.random.normal(k2, (2, 8, 32, 32), dtype=jnp.float32)
    y2_ref = x2 * jax.nn.sigmoid(x2)
    y2 = lambda_forward(x2, force_pallas=True, max_block_bytes=16 * 1024)
    jax.block_until_ready(y2)
    assert y2.shape == x2.shape and y2.dtype == x2.dtype
    assert jnp.allclose(y2, y2_ref, atol=1e-4, rtol=1e-4)

    # bf16 activation: native bf16 math on v6e/v7x, f32 upcast on v5e.
    x3 = jax.random.normal(k3, (2, 4, 16, 16), dtype=jnp.bfloat16)
    x3_f32 = x3.astype(jnp.float32)
    y3_ref = (x3_f32 * jax.nn.sigmoid(x3_f32)).astype(jnp.bfloat16)
    y3 = lambda_forward(x3, force_pallas=True)
    jax.block_until_ready(y3)
    assert y3.shape == x3.shape and y3.dtype == x3.dtype
    assert jnp.allclose(y3.astype(jnp.float32), y3_ref.astype(jnp.float32),
                        atol=2e-2, rtol=2e-2)

    print("KERNEL_OK")
</pallas_src>

<mosaic_0001>
module attributes {stable_mosaic.version = 11 : i64} {
  func.func @_lambda_silu_kernel(%arg0: i32, %arg1: memref<8x256xf32, #tpu.memory_space<vmem>>, %arg2: memref<8x256xf32, #tpu.memory_space<vmem>>) attributes {dimension_semantics = [#tpu.dimension_semantics<parallel>], iteration_bounds = array<i64: 1>, scalar_prefetch = 0 : i64, scratch_operands = 0 : i64, tpu.core_type = #tpu.core_type<tc>, window_params = [{transform_indices = @transform_0, window_bounds = array<i64: 8, 256>}, {transform_indices = @transform_1, window_bounds = array<i64: 8, 256>}]} {
    %c0 = arith.constant 0 : index
    %c0_0 = arith.constant 0 : index
    %0 = vector.load %arg1[%c0, %c0_0] : memref<8x256xf32, #tpu.memory_space<vmem>>, vector<8x256xf32>
    %cst = arith.constant 5.000000e-01 : f32
    %1 = vector.broadcast %cst : f32 to vector<8x256xf32>
    %2 = arith.mulf %0, %1 : vector<8x256xf32>
    %3 = math.tanh %2 : vector<8x256xf32>
    %4 = arith.mulf %2, %3 : vector<8x256xf32>
    %5 = arith.addf %4, %2 : vector<8x256xf32>
    %c0_1 = arith.constant 0 : index
    %c0_2 = arith.constant 0 : index
    %6 = vector.load %arg2[%c0_1, %c0_2] : memref<8x256xf32, #tpu.memory_space<vmem>>, vector<8x256xf32>
    tpu.vector_store %arg2[%c0_1, %c0_2], %5 {strides = array<i32>} : memref<8x256xf32, #tpu.memory_space<vmem>>, vector<8x256xf32>,
    return
  }
  func.func @transform_0(%arg0: i32) -> (i32, i32) {
    %c0_i32 = arith.constant 0 : i32
    %c0_i32_0 = arith.constant 0 : i32
    return %arg0, %c0_i32 : i32, i32
  }
  func.func @transform_1(%arg0: i32) -> (i32, i32) {
    %c0_i32 = arith.constant 0 : i32
    %c0_i32_0 = arith.constant 0 : i32
    return %arg0, %c0_i32 : i32, i32
  }
}

</mosaic_0001>

<llo_original>
// kernel: tpu_custom_call.1
$region0: #{tpu_custom_call.1}
  #allocation0 [shape = 'u32[]', space=smem, size = 0x4, offset = 0x4, fixed_abs, tag = 'smem constant byte address 0x4 - core index']
  #allocation1 [shape = 'u32[72,128]{1,0:T(1,128)}', space=vmem, size = 0x9000, scoped, tag = 'internal scratch']
  %s0 = inlined_call_operand.hbm [shape: f32[8,256], index: 0, kind: input, shape index: {}, may-alias: {0,1}]
  %s1 = inlined_call_operand.hbm [shape: f32[8,256], index: 1, kind: output, shape index: {}, may-alias: {0,1}]
  %s2 = sld [smem:[#allocation0]]
  $region18: #{tpu_custom_call.1} parent=0
    _
  %s4 = ssub.s32 1, %s2
  %s5 = scalar_select 0, %s4, %s2
  $region1: #{tpu_custom_call.1} parent=0
    #allocation2 [shape = 'u8[8192]{0}', space=vmem, size = 0x2000, scoped, tag = 'input window, operand 0, single buffered']
    #allocation3 [shape = 's32[1]{0}', space=sflag, size = 0x4, scoped, tag = 'scoped memory for tpu_custom_call.1']
    #allocation4 [shape = 's32[1]{0}', space=sflag, size = 0x4, scoped, tag = 'scoped memory for tpu_custom_call.1']
    #allocation5 [shape = 'u8[8192]{0}', space=vmem, size = 0x2000, scoped, tag = 'output window, operand 0, single buffered']
    %6 = vsyncpa [#allocation3], 0
    %7 = vsyncpa [#allocation4], 0
    // Predicated region
    $region2: #{tpu_custom_call.1} parent=1 // pred_check
      _
    $region3: #{tpu_custom_call.1} parent=1 // pred_check_branch
      %9 = sbr.rel (0) target = $region5
    $region4: #{tpu_custom_call.1} parent=1 // pred_region
      %11 = vsyncadd [#allocation3], 0
      %s13 = sshll.u32 %s0, 4
      %s14 = int_to_ptr.hbm [resolvable:$true] %s13
      %s15 = sshll.u32 [#allocation2], 4
      %s16 = int_to_ptr.vmem [resolvable:$true] %s15
      %18 = dma.hbm_to_vmem [thread:$0]  %s14, 256, %s16, [#allocation3]
    $region5: #{tpu_custom_call.1} parent=1 // pred_fallthru
      _
    // Predicated region
    $region6: #{tpu_custom_call.1} parent=1 // pred_check
      _
    $region7: #{tpu_custom_call.1} parent=1 // pred_check_branch
      %20 = sbr.rel (0) target = $region9
    $region8: #{tpu_custom_call.1} parent=1 // pred_region
      %22 = dma.done [#allocation3], 256
    $region9: #{tpu_custom_call.1} parent=1 // pred_fallthru
      _
    %v23 = vld [vmem:[#allocation2] sm:$0xff]
    %v24 = vld [vmem:[#allocation2 + $0x8] sm:$0xff]
    %v25 = vmul.f32 %v23, 0.5
    %v26 = vmul.f32 %v24, 0.5
    %v27 = vtanh.pop %v25
    %v28 = vtanh.pop %v26
    %v29 = vmul.f32 %v25, %v27
    %v30 = vmul.f32 %v26, %v28
    %v31 = vadd.f32 %v29, %v25
    %v32 = vadd.f32 %v30, %v26
    %33 = vst [vmem:[#allocation5] sm:$0xff] %v31
    %34 = vst [vmem:[#allocation5 + $0x8] sm:$0xff] %v32
    // Predicated region
    $region10: #{tpu_custom_call.1} parent=1 // pred_check
      _
    $region11: #{tpu_custom_call.1} parent=1 // pred_check_branch
      %36 = sbr.rel (0) target = $region13
    $region12: #{tpu_custom_call.1} parent=1 // pred_region
      %38 = vsyncadd [#allocation4], 0
      %s40 = sshll.u32 [#allocation5], 4
      %s41 = int_to_ptr.vmem [resolvable:$true] %s40
      %s42 = sshll.u32 %s1, 4
      %s43 = int_to_ptr.hbm [resolvable:$true] %s42
      %45 = dma.vmem_to_hbm [thread:$0]  %s41, 256, %s43, [#allocation4]
    $region13: #{tpu_custom_call.1} parent=1 // pred_fallthru
      _
    // Predicated region
    $region14: #{tpu_custom_call.1} parent=1 // pred_check
      _
    $region15: #{tpu_custom_call.1} parent=1 // pred_check_branch
      %47 = sbr.rel (0) target = $region17
    $region16: #{tpu_custom_call.1} parent=1 // pred_region
      %49 = dma.done [#allocation4], 256
    $region17: #{tpu_custom_call.1} parent=1 // pred_fallthru
      _
    %50 = vsyncpa [#allocation3], 1
    %51 = vsyncpa [#allocation4], 1

</llo_original>
